<compile_context>
chip_gen: v7x
topology: tpu7x:2x2x1
jax: 0.10.0
libtpu: 0.0.40
codegen_flags: <defaults>
</compile_context>

<pallas_src>
import jax
import jax.numpy as jnp
from jax.experimental import pallas as pl
from jax.experimental.pallas import tpu as pltpu


BN_EPS = 1e-5


# ----------------------------- kernels --------------------------------------

def _stats1_kernel(x_ref, w1t_ref, st_ref):
    # x: (Cin, TM), w1t: (hidden, Cin) -> h: (hidden, TM)
    h = jnp.dot(w1t_ref[...], x_ref[...], preferred_element_type=jnp.float32)
    st_ref[:, 0:1] = jnp.sum(h, axis=1, keepdims=True)
    st_ref[:, 1:2] = jnp.sum(h * h, axis=1, keepdims=True)


def _make_stats2_kernel(tm, m_true, needs_mask):
    def kernel(x_ref, w1t_ref, s1_ref, w2t_ref, st_ref):
        h = jnp.dot(w1t_ref[...], x_ref[...],
                    preferred_element_type=jnp.float32)
        # folded BN1 + ReLU
        a = jnp.maximum(h * s1_ref[:, 0:1] + s1_ref[:, 1:2], 0.0)
        if needs_mask:
            # zero padded columns so they do not pollute the BN2 statistics
            col = (jax.lax.broadcasted_iota(jnp.int32, a.shape, 1)
                   + pl.program_id(0) * tm)
            a = jnp.where(col < m_true, a, 0.0)
        y = jnp.dot(w2t_ref[...], a, preferred_element_type=jnp.float32)
        st_ref[:, 0:1] = jnp.sum(y, axis=1, keepdims=True)
        st_ref[:, 1:2] = jnp.sum(y * y, axis=1, keepdims=True)
    return kernel


def _final_kernel(x_ref, w1t_ref, s1_ref, w2t_ref, s2_ref, o_ref):
    h = jnp.dot(w1t_ref[...], x_ref[...], preferred_element_type=jnp.float32)
    a = jnp.maximum(h * s1_ref[:, 0:1] + s1_ref[:, 1:2], 0.0)
    y = jnp.dot(w2t_ref[...], a, preferred_element_type=jnp.float32)
    o_ref[...] = jnp.maximum(y * s2_ref[:, 0:1] + s2_ref[:, 1:2], 0.0)


# ----------------------------- wrapper ---------------------------------------

def _round_up(x, n):
    return (x + n - 1) // n * n


def _fold_bn(stats, gamma, beta, m):
    """Combine per-tile partial [sum, sumsq] into folded BN scale/shift."""
    s = jnp.sum(stats[:, :, 0], axis=0)
    ss = jnp.sum(stats[:, :, 1], axis=0)
    mean = s / m
    var = jnp.maximum(ss / m - mean * mean, 0.0)
    scale = gamma * jax.lax.rsqrt(var + BN_EPS)
    shift = beta - mean * scale
    return jnp.stack([scale, shift], axis=1).astype(jnp.float32)   # (C, 2)


def mlp_forward(x_nchw, params, tm=2048):
    """x_nchw: (N, Cin, H, W) f32 -> (N, Cout, H, W) f32 (training-mode BN)."""
    w1, _b1, g1, be1, w2, _b2, g2, be2 = params   # conv biases cancel under BN
    n, cin, hh, ww = x_nchw.shape
    hidden = w1.shape[1]
    cout = w2.shape[1]
    m = n * hh * ww

    # NCHW -> (Cin, M): leading-dim transpose only, H/W stay minor.
    x2d = jnp.transpose(x_nchw, (1, 0, 2, 3)).reshape(cin, m).astype(jnp.float32)

    tm = min(tm, _round_up(m, 128))
    m_pad = _round_up(m, tm)
    if m_pad != m:
        x2d = jnp.pad(x2d, ((0, 0), (0, m_pad - m)))
    num_tiles = m_pad // tm

    w1t = jnp.transpose(w1).astype(jnp.float32)   # (hidden, Cin)
    w2t = jnp.transpose(w2).astype(jnp.float32)   # (Cout, hidden)

    x_spec = pl.BlockSpec((cin, tm), lambda i: (0, i))
    full = lambda a: pl.BlockSpec(a.shape, lambda i, _nd=a.ndim: (0,) * _nd)
    par = pltpu.CompilerParams(dimension_semantics=("parallel",))

    # ---- pass 1: BN1 statistics ---------------------------------------------
    stats1 = pl.pallas_call(
        _stats1_kernel,
        out_shape=jax.ShapeDtypeStruct((num_tiles, hidden, 2), jnp.float32),
        grid=(num_tiles,),
        in_specs=[x_spec, full(w1t)],
        out_specs=pl.BlockSpec((None, hidden, 2), lambda i: (i, 0, 0)),
        compiler_params=par,
        cost_estimate=pl.CostEstimate(
            flops=2 * m_pad * cin * hidden + 4 * m_pad * hidden,
            transcendentals=0,
            bytes_accessed=4 * (m_pad * cin + cin * hidden
                                + num_tiles * hidden * 2)),
    )(x2d, w1t)
    s1 = _fold_bn(stats1, g1, be1, m)             # (hidden, 2) scale/shift

    # ---- pass 2: BN2 statistics ---------------------------------------------
    stats2 = pl.pallas_call(
        _make_stats2_kernel(tm, m, m_pad != m),
        out_shape=jax.ShapeDtypeStruct((num_tiles, cout, 2), jnp.float32),
        grid=(num_tiles,),
        in_specs=[x_spec, full(w1t), full(s1), full(w2t)],
        out_specs=pl.BlockSpec((None, cout, 2), lambda i: (i, 0, 0)),
        compiler_params=par,
        cost_estimate=pl.CostEstimate(
            flops=2 * m_pad * (cin * hidden + hidden * cout)
                  + m_pad * (3 * hidden + 4 * cout),
            transcendentals=0,
            bytes_accessed=4 * (m_pad * cin + cin * hidden + hidden * cout
                                + hidden * 2 + num_tiles * cout * 2)),
    )(x2d, w1t, s1, w2t)
    s2 = _fold_bn(stats2, g2, be2, m)             # (cout, 2)

    # ---- pass 3: normalized output (lane-dense (Cout, M) store) -------------
    out2d = pl.pallas_call(
        _final_kernel,
        out_shape=jax.ShapeDtypeStruct((cout, m_pad), jnp.float32),
        grid=(num_tiles,),
        in_specs=[x_spec, full(w1t), full(s1), full(w2t), full(s2)],
        out_specs=pl.BlockSpec((cout, tm), lambda i: (0, i)),
        compiler_params=par,
        cost_estimate=pl.CostEstimate(
            flops=2 * m_pad * (cin * hidden + hidden * cout)
                  + 3 * m_pad * (hidden + cout),
            transcendentals=0,
            bytes_accessed=4 * (m_pad * (cin + cout) + cin * hidden
                                + hidden * cout + (hidden + cout) * 2)),
    )(x2d, w1t, s1, w2t, s2)

    # (Cout, M) -> NCHW
    return jnp.transpose(out2d[:, :m].reshape(cout, n, hh, ww), (1, 0, 2, 3))


# ----------------------------- init / reference ------------------------------

def init_params(key, in_channel, out_channel, hidden):
    """Mirror the PyTorch module: Conv2d weights xavier_uniform, biases 0.01,
       BatchNorm gamma=1, beta=0 (training mode)."""
    k1, k2 = jax.random.split(key)

    def xavier(k, fan_in, fan_out):
        bound = (6.0 / (fan_in + fan_out)) ** 0.5
        # PyTorch Conv2d weight is (out, in, 1, 1); stored transposed (in, out)
        return jax.random.uniform(k, (fan_in, fan_out), jnp.float32, -bound, bound)

    w1 = xavier(k1, in_channel, hidden)
    b1 = jnp.full((hidden,), 0.01, jnp.float32)
    g1 = jnp.ones((hidden,), jnp.float32)
    be1 = jnp.zeros((hidden,), jnp.float32)

    w2 = xavier(k2, hidden, out_channel)
    b2 = jnp.full((out_channel,), 0.01, jnp.float32)
    g2 = jnp.ones((out_channel,), jnp.float32)
    be2 = jnp.zeros((out_channel,), jnp.float32)
    return (w1, b1, g1, be1, w2, b2, g2, be2)


def _reference(x_nchw, params):
    """Pure-JAX reference with the full PyTorch semantics (incl. conv bias)."""
    w1, b1, g1, be1, w2, b2, g2, be2 = params

    def conv1x1(x, w, b):
        return jnp.einsum('nchw,cd->ndhw', x, w) + b[None, :, None, None]

    def bn(x, gamma, beta):
        mean = x.mean(axis=(0, 2, 3), keepdims=True)
        var = ((x - mean) ** 2).mean(axis=(0, 2, 3), keepdims=True)
        return ((x - mean) * jax.lax.rsqrt(var + BN_EPS)
                * gamma[None, :, None, None] + beta[None, :, None, None])

    h = jnp.maximum(bn(conv1x1(x_nchw, w1, b1), g1, be1), 0.0)
    y = jnp.maximum(bn(conv1x1(h, w2, b2), g2, be2), 0.0)
    return y


if __name__ == "__main__":
    key = jax.random.PRNGKey(0)
    kx, kp = jax.random.split(key)

    N, C_IN, H, W = 2, 4, 16, 16
    HIDDEN, C_OUT = 32, 8

    x = jax.random.normal(kx, (N, C_IN, H, W), jnp.float32)
    params = init_params(kp, C_IN, C_OUT, HIDDEN)

    # small tile so the demo exercises the multi-tile / cross-tile-stats path
    out = jax.block_until_ready(mlp_forward(x, params, tm=128))
    ref = jax.block_until_ready(_reference(x, params))
    assert out.shape == (N, C_OUT, H, W), out.shape
    assert jnp.allclose(out, ref, atol=1e-4, rtol=1e-4), "mismatch vs reference"

    # ragged M (padding path): H=15 -> M=480, padded to 512 with tm=128
    x2 = jax.random.normal(kx, (N, C_IN, 15, W), jnp.float32)
    out2 = jax.block_until_ready(mlp_forward(x2, params, tm=128))
    ref2 = jax.block_until_ready(_reference(x2, params))
    assert jnp.allclose(out2, ref2, atol=1e-4, rtol=1e-4), "mismatch (padded M)"

    print("KERNEL_OK")
</pallas_src>

<mosaic_0001>
module attributes {stable_mosaic.version = 11 : i64} {
  func.func @_stats1_kernel(%arg0: i32, %arg1: memref<4x128xf32, #tpu.memory_space<vmem>>, %arg2: memref<32x4xf32, #tpu.memory_space<vmem>>, %arg3: memref<1x32x2xf32, #tpu.memory_space<vmem>>) attributes {dimension_semantics = [#tpu.dimension_semantics<parallel>], iteration_bounds = array<i64: 4>, scalar_prefetch = 0 : i64, scratch_operands = 0 : i64, tpu.core_type = #tpu.core_type<tc>, window_params = [{transform_indices = @transform_0, window_bounds = array<i64: 4, 128>}, {pipeline_mode = #tpu.pipeline_mode<synchronous>, transform_indices = @transform_1, window_bounds = array<i64: 32, 4>}, {transform_indices = @transform_2, window_bounds = array<i64: 1, 32, 2>}]} {
    %c0 = arith.constant 0 : index
    %c0_0 = arith.constant 0 : index
    %0 = vector.load %arg2[%c0, %c0_0] : memref<32x4xf32, #tpu.memory_space<vmem>>, vector<32x4xf32>
    %c0_1 = arith.constant 0 : index
    %c0_2 = arith.constant 0 : index
    %1 = vector.load %arg1[%c0_1, %c0_2] : memref<4x128xf32, #tpu.memory_space<vmem>>, vector<4x128xf32>
    %cst = arith.constant dense<0.000000e+00> : vector<32x128xf32>
    %2 = tpu.matmul %0, %1, %cst {dimension_numbers = #tpu.dot_dimension_numbers<[1], [0], [0], [1], [0, 0, 1, 1], [], []>} : vector<32x4xf32>, vector<4x128xf32>, vector<32x128xf32> -> vector<32x128xf32>
    %cst_3 = arith.constant dense<0.000000e+00> : vector<32xf32>
    %3 = vector.multi_reduction <add>, %2, %cst_3 [1] : vector<32x128xf32> to vector<32xf32>
    %4 = vector.shape_cast %3 : vector<32xf32> to vector<32x1xf32>
    %c0_4 = arith.constant 0 : index
    %c0_5 = arith.constant 0 : index
    %c0_6 = arith.constant 0 : index
    %5 = vector.load %arg3[%c0_4, %c0_5, %c0_6] : memref<1x32x2xf32, #tpu.memory_space<vmem>>, vector<1x32x1xf32>
    %6 = vector.shape_cast %5 : vector<1x32x1xf32> to vector<32x1xf32>
    %7 = vector.shape_cast %4 : vector<32x1xf32> to vector<1x32x1xf32>
    tpu.vector_store %arg3[%c0_4, %c0_5, %c0_6], %7 {strides = array<i32>} : memref<1x32x2xf32, #tpu.memory_space<vmem>>, vector<1x32x1xf32>,
    %8 = arith.mulf %2, %2 : vector<32x128xf32>
    %cst_7 = arith.constant dense<0.000000e+00> : vector<32xf32>
    %9 = vector.multi_reduction <add>, %8, %cst_7 [1] : vector<32x128xf32> to vector<32xf32>
    %10 = vector.shape_cast %9 : vector<32xf32> to vector<32x1xf32>
    %c0_8 = arith.constant 0 : index
    %c0_9 = arith.constant 0 : index
    %c1 = arith.constant 1 : index
    %11 = vector.load %arg3[%c0_8, %c0_9, %c1] : memref<1x32x2xf32, #tpu.memory_space<vmem>>, vector<1x32x1xf32>
    %12 = vector.shape_cast %11 : vector<1x32x1xf32> to vector<32x1xf32>
    %13 = vector.shape_cast %10 : vector<32x1xf32> to vector<1x32x1xf32>
    tpu.vector_store %arg3[%c0_8, %c0_9, %c1], %13 {strides = array<i32>} : memref<1x32x2xf32, #tpu.memory_space<vmem>>, vector<1x32x1xf32>,
    return
  }
  func.func @transform_0(%arg0: i32) -> (i32, i32) {
    %c0_i32 = arith.constant 0 : i32
    %c0_i32_0 = arith.constant 0 : i32
    return %c0_i32, %arg0 : i32, i32
  }
  func.func @transform_1(%arg0: i32) -> (i32, i32) {
    %c0_i32 = arith.constant 0 : i32
    %c0_i32_0 = arith.constant 0 : i32
    %c0_i32_1 = arith.constant 0 : i32
    return %c0_i32, %c0_i32_0 : i32, i32
  }
  func.func @transform_2(%arg0: i32) -> (i32, i32, i32) {
    %c0_i32 = arith.constant 0 : i32
    %c0_i32_0 = arith.constant 0 : i32
    %c0_i32_1 = arith.constant 0 : i32
    return %arg0, %c0_i32, %c0_i32_0 : i32, i32, i32
  }
}

</mosaic_0001>

<llo_original>
// kernel: tpu_custom_call.1
$region0: #{tpu_custom_call.1}
  #allocation0 [shape = 'u32[]', space=smem, size = 0x4, offset = 0x4, fixed_abs, tag = 'smem constant byte address 0x4 - core index']
  #allocation1 [shape = 'u32[144,128]{1,0:T(1,128)}', space=vmem, size = 0x12000, scoped, tag = 'internal scratch']
  %s0 = inlined_call_operand.vmem [shape: f32[4,512], index: 0, kind: input, shape index: {}]
  %s1 = inlined_call_operand.vmem [shape: f32[32,4], index: 1, kind: input, shape index: {}]
  %s2 = inlined_call_operand.vmem [shape: f32[4,32,2], index: 2, kind: output, shape index: {}]
  %s3 = sld [smem:[#allocation0]]
  $region41: #{tpu_custom_call.1} parent=0
    _
  %s5 = ssub.s32 1, %s3
  %s6 = scalar_select 0, %s5, %s3
  loop: start=0, step=1, limit=6
  $region2: #{tpu_custom_call.1} parent=0 // loop_pre_header
    _
  $region3: #{tpu_custom_call.1} parent=0 // loop_header
    %s8 = sphi 0, %s12
    %p9 = scmp.ge.s32.totalorder %s8, 6
    %s18 = sphi 0, %s20
    %s21 = sphi 0, %s18
    %s22 = sphi 0, %s21
    %s38 = sphi 0, %s22
    %s42 = sphi 0, %s42
    %s44 = sphi 0, %s42
    %s45 = sphi 0, %s44
    %s59 = sphi 0, %s45
    %s65 = sphi 0, %s67
    %s68 = sphi 0, %s65
    %s69 = sphi 0, %s68
    %s85 = sphi 0, %s69
  $region4: #{tpu_custom_call.1} parent=0 // loop_header_branch
    %11 = sbr.rel (%p9) target = $region8
  $region5: #{tpu_custom_call.1} parent=0 // loop_body
    %s13 = ssub.s32 %s8, 1
    %s14 = ssub.s32 %s8, 2
    %s15 = sadd.s32 %s8, 1
    %s16 = ssub.s32 %s8, %s15
    %p17 = scmp.eq.s32.totalorder %s16, 0
    %s19 = sadd.s32 %s18, 1
    %s20 = scalar_select %p17, %s18, %s19
    %p23 = pneg %p17
    %p24 = scmp.eq.s32.totalorder %s8, 3
    %p25 = por %p23, %p24
    %p26 = scmp.ne.s32.totalorder %s18, %s21
    %p27 = scmp.eq.s32.totalorder %s8, 0
    %p28 = por %p26, %p27
    %p29 = scmp.ne.s32.totalorder %s18, %s21
    %p30 = scmp.eq.s32.totalorder %s13, 3
    %p31 = por %p29, %p30
    %p32 = scmp.ne.s32.totalorder %s21, %s22
    %p33 = scmp.eq.s32.totalorder %s13, 0
    %p34 = por %p32, %p33
    %p35 = scmp.ne.s32.totalorder %s21, %s22
    %p36 = scmp.eq.s32.totalorder %s14, 3
    %p37 = por %p35, %p36
    %p39 = scmp.ne.s32.totalorder %s22, %s38
    %p40 = scmp.eq.s32.totalorder %s14, 0
    %p41 = por %p39, %p40
    %s43 = sadd.s32 %s42, 1
    %p46 = scmp.eq.s32.totalorder %s8, 3
    %p47 = scmp.ne.s32.totalorder %s42, %s44
    %p48 = scmp.eq.s32.totalorder %s8, 0
    %p49 = por %p47, %p48
    %p50 = scmp.ne.s32.totalorder %s42, %s44
    %p51 = scmp.eq.s32.totalorder %s13, 3
    %p52 = por %p50, %p51
    %p53 = scmp.ne.s32.totalorder %s44, %s45
    %p54 = scmp.eq.s32.totalorder %s13, 0
    %p55 = por %p53, %p54
    %p56 = scmp.ne.s32.totalorder %s44, %s45
    %p57 = scmp.eq.s32.totalorder %s14, 3
    %p58 = por %p56, %p57
    %p60 = scmp.ne.s32.totalorder %s45, %s59
    %p61 = scmp.eq.s32.totalorder %s14, 0
    %p62 = por %p60, %p61
    %s63 = ssub.s32 %s8, %s15
    %p64 = scmp.eq.s32.totalorder %s63, 0
    %s66 = sadd.s32 %s65, 1
    %s67 = scalar_select %p64, %s65, %s66
    %p70 = pneg %p64
    %p71 = scmp.eq.s32.totalorder %s8, 3
    %p72 = por %p70, %p71
    %p73 = scmp.ne.s32.totalorder %s65, %s68
    %p74 = scmp.eq.s32.totalorder %s8, 0
    %p75 = por %p73, %p74
    %p76 = scmp.ne.s32.totalorder %s65, %s68
    %p77 = scmp.eq.s32.totalorder %s13, 3
    %p78 = por %p76, %p77
    %p79 = scmp.ne.s32.totalorder %s68, %s69
    %p80 = scmp.eq.s32.totalorder %s13, 0
    %p81 = por %p79, %p80
    %p82 = scmp.ne.s32.totalorder %s68, %s69
    %p83 = scmp.eq.s32.totalorder %s14, 3
    %p84 = por %p82, %p83
    %p86 = scmp.ne.s32.totalorder %s69, %s85
    %p87 = scmp.eq.s32.totalorder %s14, 0
    %p88 = por %p86, %p87
    %p89 = scmp.le.s32.totalorder 1, %s8
    %p90 = scmp.lt.s32.totalorder %s8, 5
    %p91 = pnand %p89, %p90
    %p92 = pneg %p91
    // Predicated region
    $region9: #{tpu_custom_call.1} parent=5 // pred_check
      _
    $region10: #{tpu_custom_call.1} parent=5 // pred_check_branch
      %94 = sbr.rel (%p91) target = $region12
    $region11: #{tpu_custom_call.1} parent=5 // pred_region
      %s95 = ssub.s32 %s8, 1
      // Predicated region
      $region13: #{tpu_custom_call.1} parent=11 // pred_check
        %p96 = pneg %p55
      $region14: #{tpu_custom_call.1} parent=11 // pred_check_branch
        %98 = sbr.rel (%p96) target = $region16
      $region15: #{tpu_custom_call.1} parent=11 // pred_region
        _
      $region16: #{tpu_custom_call.1} parent=11 // pred_fallthru
        _
    $region12: #{tpu_custom_call.1} parent=5 // pred_fallthru
      _
    %p99 = scmp.lt.s32.totalorder %s8, 4
    // Predicated region
    $region17: #{tpu_custom_call.1} parent=5 // pred_check
      %p100 = pneg %p99
    $region18: #{tpu_custom_call.1} parent=5 // pred_check_branch
      %102 = sbr.rel (%p100) target = $region20
    $region19: #{tpu_custom_call.1} parent=5 // pred_region
      // Predicated region
      $region21: #{tpu_custom_call.1} parent=19 // pred_check
        %p103 = pneg %p28
      $region22: #{tpu_custom_call.1} parent=19 // pred_check_branch
        %105 = sbr.rel (%p103) target = $region24
      $region23: #{tpu_custom_call.1} parent=19 // pred_region
        %p106 = scmp.lt.s32.totalorder %s8, 3
        %s107 = scalar_select %p106, %s8, 3
        %s108 = smul.addr %s107, 4
        %s109 = scalar_lea.vmem %s0, %s108
      $region24: #{tpu_custom_call.1} parent=19 // pred_fallthru
        _
    $region20: #{tpu_custom_call.1} parent=5 // pred_fallthru
      _
    %p110 = scmp.le.s32.totalorder 1, %s8
    %p111 = scmp.lt.s32.totalorder %s8, 5
    %p112 = pnand %p110, %p111
    %p113 = pneg %p112
    // Predicated region
    $region25: #{tpu_custom_call.1} parent=5 // pred_check
      _
    $region26: #{tpu_custom_call.1} parent=5 // pred_check_branch
      %115 = sbr.rel (%p112) target = $region28
    $region27: #{tpu_custom_call.1} parent=5 // pred_region
      %s116 = ssub.s32 %s8, 1
      %p117 = scmp.lt.s32.totalorder %s13, 3
      %s118 = scalar_select %p117, %s13, 3
      %s119 = smul.addr %s118, 4
      %s120 = scalar_lea.vmem %s0, %s119
      %p121 = pneg %p34
      %p122 = pneg %p31
      %p123 = pneg %p55
      %p124 = pneg %p52
      %p125 = pneg %p81
      %p126 = pneg %p78
      %p127 = scmp.lt.s32.totalorder %s13, 3
      %s128 = scalar_select %p127, %s13, 3
      %s129 = smul.addr %s128, 4
      %s130 = smul.addr %s129, 8
      %s131 = scalar_lea.vmem %s2, %s130
      %p132 = scmp.lt.s32.totalorder %s13, 3
      %s133 = scalar_select %p132, %s13, 3
      %s134 = smul.addr %s133, 4
      %s135 = scalar_lea.vmem %s0, %s134
      %p136 = scmp.lt.s32.totalorder %s13, 3
      %s137 = scalar_select %p136, %s13, 3
      %s138 = smul.addr %s137, 4
      %s139 = smul.addr %s138, 8
      %s140 = scalar_lea.vmem %s2, %s139
      %v141 = vld [vmem:[%s1] sm:$0xff]
      %v142 = vld [vmem:[%s1 + $0x8] sm:$0xff]
      %v143 = vld [vmem:[%s1 + $0x10] sm:$0xff]
      %v144 = vld [vmem:[%s1 + $0x18] sm:$0xff]
      %v145 = vld [vmem:[%s135] sm:$0xf]
      %vm146 = vcmask 31744
      %v148 = vsel %vm146, %v141, 0
      %v151 = vsel %vm146, %v142, 0
      %v154 = vsel %vm146, %v143, 0
      %v157 = vsel %vm146, %v144, 0
      %vm159 = vcmask 1043456
      %v161 = vsel %vm159, %v145, 0
      %163 = vmatprep.subr.mxu0 0.0
      %164 = vmatpush1.msra.mxu0 %v161
      %165 = vmatprep.subr.mxu0 0.0
      %166 = vmatpush1.msra.mxu0 0.0
      %167 = vmatprep.subr.mxu0 0.0
      %168 = vmatpush1.msra.mxu0 0.0
      %169 = vmatprep.subr.mxu0 0.0
      %170 = vmatpush1.msra.mxu0 0.0
      %171 = vmatprep.subr.mxu0 0.0
      %172 = vmatpush1.msra.mxu0 0.0
      %173 = vmatprep.subr.mxu0 0.0
      %174 = vmatpush1.msra.mxu0 0.0
      %175 = vmatprep.subr.mxu0 0.0
      %176 = vmatpush1.msra.mxu0 0.0
      %177 = vmatprep.subr.mxu0 0.0
      %178 = vmatpush1.msra.mxu0 0.0
      %179 = vmatprep.subr.mxu0 0.0
      %180 = vmatpush1.msra.mxu0 0.0
      %181 = vmatprep.subr.mxu0 0.0
      %182 = vmatpush1.msra.mxu0 0.0
      %183 = vmatprep.subr.mxu0 0.0
      %184 = vmatpush1.msra.mxu0 0.0
      %185 = vmatprep.subr.mxu0 0.0
      %186 = vmatpush1.msra.mxu0 0.0
      %187 = vmatprep.subr.mxu0 0.0
      %188 = vmatpush1.msra.mxu0 0.0
      %189 = vmatprep.subr.mxu0 0.0
      %190 = vmatpush1.msra.mxu0 0.0
      %191 = vmatprep.subr.mxu0 0.0
      %192 = vmatpush1.msra.mxu0 0.0
      %193 = vmatprep.subr.mxu0 0.0
      %194 = vmatpush1.msra.mxu0 0.0
      %195 = vmatprep.subr.mxu0 0.0
      %196 = vmatpush1.msra.mxu0 0.0
      %197 = vmatprep.subr.mxu0 0.0
      %198 = vmatpush1.msra.mxu0 0.0
      %199 = vmatprep.subr.mxu0 0.0
      %200 = vmatpush1.msra.mxu0 0.0
      %201 = vmatprep.subr.mxu0 0.0
      %202 = vmatpush1.msra.mxu0 0.0
      %203 = vmatprep.subr.mxu0 0.0
      %204 = vmatpush1.msra.mxu0 0.0
      %205 = vmatprep.subr.mxu0 0.0
      %206 = vmatpush1.msra.mxu0 0.0
      %207 = vmatprep.subr.mxu0 0.0
      %208 = vmatpush1.msra.mxu0 0.0
      %209 = vmatprep.subr.mxu0 0.0
      %210 = vmatpush1.msra.mxu0 0.0
      %211 = vmatprep.subr.mxu0 0.0
      %212 = vmatpush1.msra.mxu0 0.0
      %213 = vmatprep.subr.mxu0 0.0
      %214 = vmatpush1.msra.mxu0 0.0
      %215 = vmatprep.subr.mxu0 0.0
      %216 = vmatpush1.msra.mxu0 0.0
      %217 = vmatprep.subr.mxu0 0.0
      %218 = vmatpush1.msra.mxu0 0.0
      %219 = vmatprep.subr.mxu0 0.0
      %220 = vmatpush1.msra.mxu0 0.0
      %221 = vmatprep.subr.mxu0 0.0
      %222 = vmatpush1.msra.mxu0 0.0
      %223 = vmatprep.subr.mxu0 0.0
      %224 = vmatpush1.msra.mxu0 0.0
      %225 = vmatprep.subr.mxu0 0.0
      %226 = vmatpush1.msra.mxu0 0.0
      %227 = vmatprep.mubr.f32.mxu0 0.0
      %228 = vmatmul.mubr.f32.gmra.mrb[0].mxu0 %v148
      %v229 = vpop.f32.mrb[0].mxu0
      %v230 = vadd.f32 0.0, %v229
      %v231 = vpop.f32.mrb[0].mxu0
      %232 = vmatprep.mubr.f32.mxu0 0.0
      %233 = vmatmul.mubr.f32.gmra.mrb[0].mxu0 %v151
      %v234 = vpop.f32.mrb[0].mxu0
      %v235 = vadd.f32 0.0, %v234
      %v236 = vpop.f32.mrb[0].mxu0
      %237 = vmatprep.mubr.f32.mxu0 0.0
      %238 = vmatmul.mubr.f32.gmra.mrb[0].mxu0 %v154
      %v239 = vpop.f32.mrb[0].mxu0
      %v240 = vadd.f32 0.0, %v239
      %v241 = vpop.f32.mrb[0].mxu0
      %242 = vmatprep.mubr.f32.mxu0 0.0
      %243 = vmatmul.mubr.f32.gmra.mrb[0].mxu0 %v157
      %v244 = vpop.f32.mrb[0].mxu0
      %v245 = vadd.f32 0.0, %v244
      %v246 = vpop.f32.mrb[0].mxu0
      %247 = vdwg.mxu0
      %248 = vadd.xlane.f32.xlu0 %v230
      %v249 = vpop.xlane.xlu0 %248
      %250 = vadd.xlane.f32.xlu0 %v235
      %v251 = vpop.xlane.xlu0 %250
      %252 = vadd.xlane.f32.xlu0 %v240
      %v253 = vpop.xlane.xlu0 %252
      %254 = vadd.xlane.f32.xlu0 %v245
      %v255 = vpop.xlane.xlu0 %254
      %vm256 = vcmask 7168
      %257 = vst.msk [vmem:[%s140] sm:$0xff] %vm256, %v249
      %258 = vst.msk [vmem:[%s140 + $0x8] sm:$0xff] %vm256, %v251
      %259 = vst.msk [vmem:[%s140 + $0x10] sm:$0xff] %vm256, %v253
      %260 = vst.msk [vmem:[%s140 + $0x18] sm:$0xff] %vm256, %v255
      %v261 = vmul.f32 %v230, %v230
      %v262 = vmul.f32 %v235, %v235
      %v263 = vmul.f32 %v240, %v240
      %v264 = vmul.f32 %v245, %v245
      %265 = vadd.xlane.f32.xlu0 %v261
      %v266 = vpop.xlane.xlu0 %265
      %267 = vadd.xlane.f32.xlu0 %v262
      %v268 = vpop.xlane.xlu0 %267
      %269 = vadd.xlane.f32.xlu0 %v263
      %v270 = vpop.xlane.xlu0 %269
      %271 = vadd.xlane.f32.xlu0 %v264
      %v272 = vpop.xlane.xlu0 %271
      %vm273 = vcmask 15368
      %274 = vst.msk [vmem:[%s140] sm:$0xff] %vm273, %v266
      %275 = vst.msk [vmem:[%s140 + $0x8] sm:$0xff] %vm273, %v268
      %276 = vst.msk [vmem:[%s140 + $0x10] sm:$0xff] %vm273, %v270
      %277 = vst.msk [vmem:[%s140 + $0x18] sm:$0xff] %vm273, %v272
      %p278 = scmp.lt.s32.totalorder %s13, 3
      %s279 = scalar_select %p278, %s13, 3
      %s280 = smul.addr %s279, 4
      %s281 = smul.addr %s280, 8
      %s282 = scalar_lea.vmem %s2, %s281
      // Predicated region
      $region29: #{tpu_custom_call.1} parent=27 // pred_check
        %p283 = pneg %p78
      $region30: #{tpu_custom_call.1} parent=27 // pred_check_branch
        %285 = sbr.rel (%p283) target = $region32
      $region31: #{tpu_custom_call.1} parent=27 // pred_region
        _
      $region32: #{tpu_custom_call.1} parent=27 // pred_fallthru
        _
    $region28: #{tpu_custom_call.1} parent=5 // pred_fallthru
      _
    %p286 = scmp.le.s32.totalorder 2, %s8
    // Predicated region
    $region33: #{tpu_custom_call.1} parent=5 // pred_check
      %p287 = pneg %p286
    $region34: #{tpu_custom_call.1} parent=5 // pred_check_branch
      %289 = sbr.rel (%p287) target = $region36
    $region35: #{tpu_custom_call.1} parent=5 // pred_region
      %s290 = ssub.s32 %s8, 2
      // Predicated region
      $region37: #{tpu_custom_call.1} parent=35 // pred_check
        %p291 = pneg %p84
      $region38: #{tpu_custom_call.1} parent=35 // pred_check_branch
        %293 = sbr.rel (%p291) target = $region40
      $region39: #{tpu_custom_call.1} parent=35 // pred_region
        %p294 = scmp.lt.s32.totalorder %s14, 3
        %s295 = scalar_select %p294, %s14, 3
        %s296 = smul.addr %s295, 4
        %s297 = smul.addr %s296, 8
        %s298 = scalar_lea.vmem %s2, %s297
      $region40: #{tpu_custom_call.1} parent=35 // pred_fallthru
        _
    $region36: #{tpu_custom_call.1} parent=5 // pred_fallthru
      _
  $region6: #{tpu_custom_call.1} parent=0 // loop_footer
    %s12 = sadd.s32 1, %s8
  $region7: #{tpu_custom_call.1} parent=0 // loop_footer_branch
    %7 = sbr.rel target = $region3
  $region8: #{tpu_custom_call.1} parent=0 // loop_exit
    _

</llo_original>
